<compile_context>
chip_gen: v5e
topology: v5e:2x2
jax: 0.10.0
libtpu: 0.0.40
codegen_flags: <defaults>
</compile_context>

<pallas_src>
import jax
import jax.numpy as jnp
from jax.experimental import pallas as pl
from jax.experimental.pallas import tpu as pltpu


def _round_up(n: int, m: int) -> int:
    return ((n + m - 1) // m) * m


# --------------------------------- kernel -----------------------------------
def _linear_kernel(x_ref, wt_ref, b_ref, o_ref):
    # x_ref: (TB, IN) | wt_ref: (IN, OUT) | b_ref: (1, OUT) | o_ref: (TB, OUT)
    # Canonical-axis MXU matmul with explicit f32 accumulation, VPU bias epilogue.
    y = jnp.dot(x_ref[...], wt_ref[...], preferred_element_type=jnp.float32)
    o_ref[...] = (y + b_ref[...]).astype(o_ref.dtype)


# ----------------------------- parameter layout -----------------------------
def prepare_params(w, b):
    """One-time layout transform. Call at init, NOT per forward.

    w: [OUT, IN] float32 (PyTorch nn.Linear layout)
    b: [OUT]     float32
    returns (wt [IN, OUT], b2 [1, OUT])
    """
    w = jnp.asarray(w)
    b = jnp.asarray(b)
    return w.T, b.reshape(1, -1)


# ------------------------------ tiling helpers -------------------------------
def _cap_tile_rows(tile_b, in_size, out_size, itemsize, resident_bytes,
                   vmem_budget=24 << 20):
    """Cap the batch tile so double-buffered streamed tiles + resident weight
    fit comfortably inside scoped VMEM on every generation (v7x: 64 MiB)."""
    stream_budget = max(2 << 20, vmem_budget - 2 * resident_bytes)
    per_row = 2 * (in_size + out_size) * itemsize  # double-buffered x + out rows
    max_rows = max(8, (stream_budget // per_row) // 8 * 8)
    return max(8, min(tile_b, int(max_rows)))


def _choose_batch_tiling(B, tile_b):
    """Pick (tb, padded_B, n_tiles) with minimal padding.

    - tiny B: one tile equal to the full batch, no padding at all.
    - otherwise: pad to a multiple of 8 only, and split into >=2 balanced tiles
      when there is enough work (dual TensorCore on v7x via "parallel" axis).
    """
    if B <= 8:
        return B, B, 1
    b8 = _round_up(B, 8)
    n_tiles = pl.cdiv(b8, tile_b)
    if n_tiles == 1 and b8 >= 256:      # enough rows to be worth two TCs
        n_tiles = 2
    tb = _round_up(pl.cdiv(b8, n_tiles), 8)
    n_tiles = pl.cdiv(b8, tb)
    return tb, tb * n_tiles, n_tiles


def _resident_spec(shape, nbytes, single_buffer_threshold=4 << 20):
    """BlockSpec for an operand whose block is identical at every grid step
    (stays VMEM-resident). For large blocks, request single buffering — a
    second pipeline buffer for a constant block is pure VMEM waste (matters on
    v7x's 64 MiB VMEM). Small blocks keep the plain spec path."""
    idx_map = lambda i: (0, 0)
    if nbytes >= single_buffer_threshold and hasattr(pl, "Buffered"):
        try:
            return pl.BlockSpec(shape, idx_map, pipeline_mode=pl.Buffered(1))
        except TypeError:  # older JAX without pipeline_mode support
            pass
    return pl.BlockSpec(shape, idx_map)


# --------------------------------- forward ----------------------------------
def qnetwork_forward(x, wt, b2, *, tile_b: int = 1024):
    """Forward of QNetwork: y = x @ wt + b2 (== x @ W.T + b).

    x : [B, IN]  float32
    wt: [IN, OUT] float32  (pre-transposed via prepare_params)
    b2: [1, OUT]  float32
    returns [B, OUT] float32
    """
    B, in_size = x.shape
    in_w, out_size = wt.shape
    assert in_w == in_size, "weight/input size mismatch"
    assert b2.shape == (1, out_size), "bias must be prepared as [1, OUT]"

    itemsize = x.dtype.itemsize
    resident_bytes = wt.size * wt.dtype.itemsize + b2.size * b2.dtype.itemsize

    tile_b = _cap_tile_rows(tile_b, in_size, out_size, itemsize, resident_bytes)
    tb, b_p, n_tiles = _choose_batch_tiling(B, tile_b)

    # Minimal batch padding only (<= 7 rows + tile rounding); none for tiny B.
    x_p = x if b_p == B else jnp.pad(x, ((0, b_p - B), (0, 0)))

    # VMEM budget: resident weight/bias (x2 for worst-case double buffering on
    # older JAX) + double-buffered streamed x / out tiles, with headroom.
    stream_bytes = 2 * tb * (in_size + out_size) * itemsize
    need_bytes = 2 * resident_bytes + stream_bytes
    vmem_limit = int(min(128 << 20, max(32 << 20, int(1.25 * need_bytes))))

    cost = pl.CostEstimate(
        flops=2 * B * in_size * out_size,
        transcendentals=0,
        bytes_accessed=(B * in_size + in_size * out_size + out_size
                        + B * out_size) * itemsize,
    )

    out = pl.pallas_call(
        _linear_kernel,
        out_shape=jax.ShapeDtypeStruct((b_p, out_size), x.dtype),
        grid=(n_tiles,),
        in_specs=[
            # Activations: streamed over the batch grid axis.
            pl.BlockSpec((tb, in_size), lambda i: (i, 0)),
            # Weight / bias: same block every step -> VMEM-resident across grid.
            _resident_spec((in_size, out_size), wt.size * wt.dtype.itemsize),
            _resident_spec((1, out_size), b2.size * b2.dtype.itemsize),
        ],
        out_specs=pl.BlockSpec((tb, out_size), lambda i: (i, 0)),
        compiler_params=pltpu.CompilerParams(
            # Batch axis is embarrassingly parallel (both TCs on v7x).
            dimension_semantics=("parallel",),
            vmem_limit_bytes=vmem_limit,
        ),
        cost_estimate=cost,
    )(x_p, wt, b2)

    return out if b_p == B else out[:B]


# ----------------------------------- demo ------------------------------------
if __name__ == "__main__":
    # Small shapes consistent with the module: QNetwork(input_size=32, output_size=8).
    B, IN, OUT = 4, 32, 8

    key = jax.random.PRNGKey(0)
    kx, kw, kb = jax.random.split(key, 3)

    x = jax.random.normal(kx, (B, IN), dtype=jnp.float32)
    # Deterministic params mimicking nn.Linear's uniform(-1/sqrt(IN), 1/sqrt(IN)).
    bound = 1.0 / (IN ** 0.5)
    w = jax.random.uniform(kw, (OUT, IN), dtype=jnp.float32, minval=-bound, maxval=bound)
    b = jax.random.uniform(kb, (OUT,), dtype=jnp.float32, minval=-bound, maxval=bound)

    # One-time parameter layout (outside the hot path).
    wt, b2 = prepare_params(w, b)

    # Tiny-batch path (single tile, no padding).
    out = qnetwork_forward(x, wt, b2)
    jax.block_until_ready(out)
    ref = x @ w.T + b
    assert out.shape == (B, OUT)
    assert jnp.allclose(out, ref, atol=1e-5), "mismatch vs reference (small batch)"

    # Tiled path (non-multiple-of-8 batch, dual-tile split) to exercise padding/grid logic.
    B2 = 300
    x2 = jax.random.normal(jax.random.PRNGKey(1), (B2, IN), dtype=jnp.float32)
    out2 = qnetwork_forward(x2, wt, b2)
    jax.block_until_ready(out2)
    ref2 = x2 @ w.T + b
    assert out2.shape == (B2, OUT)
    assert jnp.allclose(out2, ref2, atol=1e-5), "mismatch vs reference (tiled batch)"

    print("KERNEL_OK")
</pallas_src>

<mosaic_0001>
module attributes {stable_mosaic.version = 11 : i64} {
  func.func @_linear_kernel(%arg0: i32, %arg1: memref<4x32xf32, #tpu.memory_space<vmem>>, %arg2: memref<32x8xf32, #tpu.memory_space<vmem>>, %arg3: memref<1x8xf32, #tpu.memory_space<vmem>>, %arg4: memref<4x8xf32, #tpu.memory_space<vmem>>) attributes {dimension_semantics = [#tpu.dimension_semantics<parallel>], iteration_bounds = array<i64: 1>, scalar_prefetch = 0 : i64, scratch_operands = 0 : i64, tpu.core_type = #tpu.core_type<tc>, window_params = [{transform_indices = @transform_0, window_bounds = array<i64: 4, 32>}, {pipeline_mode = #tpu.pipeline_mode<synchronous>, transform_indices = @transform_1, window_bounds = array<i64: 32, 8>}, {pipeline_mode = #tpu.pipeline_mode<synchronous>, transform_indices = @transform_2, window_bounds = array<i64: 1, 8>}, {transform_indices = @transform_3, window_bounds = array<i64: 4, 8>}]} {
    %c0 = arith.constant 0 : index
    %c0_0 = arith.constant 0 : index
    %0 = vector.load %arg1[%c0, %c0_0] : memref<4x32xf32, #tpu.memory_space<vmem>>, vector<4x32xf32>
    %c0_1 = arith.constant 0 : index
    %c0_2 = arith.constant 0 : index
    %1 = vector.load %arg2[%c0_1, %c0_2] : memref<32x8xf32, #tpu.memory_space<vmem>>, vector<32x8xf32>
    %cst = arith.constant dense<0.000000e+00> : vector<4x8xf32>
    %2 = tpu.matmul %0, %1, %cst {dimension_numbers = #tpu.dot_dimension_numbers<[1], [0], [0], [1], [0, 0, 1, 1], [], []>} : vector<4x32xf32>, vector<32x8xf32>, vector<4x8xf32> -> vector<4x8xf32>
    %c0_3 = arith.constant 0 : index
    %c0_4 = arith.constant 0 : index
    %3 = vector.load %arg3[%c0_3, %c0_4] : memref<1x8xf32, #tpu.memory_space<vmem>>, vector<1x8xf32>
    %4 = vector.broadcast %3 : vector<1x8xf32> to vector<4x8xf32>
    %5 = arith.addf %2, %4 : vector<4x8xf32>
    %c0_5 = arith.constant 0 : index
    %c0_6 = arith.constant 0 : index
    %6 = vector.load %arg4[%c0_5, %c0_6] : memref<4x8xf32, #tpu.memory_space<vmem>>, vector<4x8xf32>
    tpu.vector_store %arg4[%c0_5, %c0_6], %5 {strides = array<i32>} : memref<4x8xf32, #tpu.memory_space<vmem>>, vector<4x8xf32>,
    return
  }
  func.func @transform_0(%arg0: i32) -> (i32, i32) {
    %c0_i32 = arith.constant 0 : i32
    %c0_i32_0 = arith.constant 0 : i32
    return %arg0, %c0_i32 : i32, i32
  }
  func.func @transform_1(%arg0: i32) -> (i32, i32) {
    %c0_i32 = arith.constant 0 : i32
    %c0_i32_0 = arith.constant 0 : i32
    %c0_i32_1 = arith.constant 0 : i32
    return %c0_i32, %c0_i32_0 : i32, i32
  }
  func.func @transform_2(%arg0: i32) -> (i32, i32) {
    %c0_i32 = arith.constant 0 : i32
    %c0_i32_0 = arith.constant 0 : i32
    %c0_i32_1 = arith.constant 0 : i32
    return %c0_i32, %c0_i32_0 : i32, i32
  }
  func.func @transform_3(%arg0: i32) -> (i32, i32) {
    %c0_i32 = arith.constant 0 : i32
    %c0_i32_0 = arith.constant 0 : i32
    return %arg0, %c0_i32 : i32, i32
  }
}

</mosaic_0001>

<llo_original>
// kernel: tpu_custom_call.1
$region0: #{tpu_custom_call.1}
  #allocation0 [shape = 'u32[]', space=smem, size = 0x4, offset = 0x4, fixed_abs, tag = 'smem constant byte address 0x4 - core index']
  #allocation1 [shape = 'u32[72,128]{1,0:T(1,128)}', space=vmem, size = 0x9000, scoped, tag = 'internal scratch']
  %s0 = inlined_call_operand.vmem [shape: f32[4,32], index: 0, kind: input, shape index: {}]
  %s1 = inlined_call_operand.vmem [shape: f32[32,8], index: 1, kind: input, shape index: {}]
  %s2 = inlined_call_operand.vmem [shape: f32[1,8], index: 2, kind: input, shape index: {}]
  %s3 = inlined_call_operand.hbm [shape: f32[4,8], index: 3, kind: output, shape index: {}]
  %s4 = sld [smem:[#allocation0]]
  $region22: #{tpu_custom_call.1} parent=0
    _
  %s6 = ssub.s32 1, %s4
  %s7 = scalar_select 0, %s6, %s4
  $region1: #{tpu_custom_call.1} parent=0
    #allocation2 [shape = 'u8[2048]{0}', space=vmem, size = 0x800, scoped, tag = 'output window, operand 0, single buffered']
    #allocation3 [shape = 's32[1]{0}', space=sflag, size = 0x4, scoped, tag = 'scoped memory for tpu_custom_call.1']
    %8 = vsyncpa [#allocation3], 0
    // Predicated region
    $region2: #{tpu_custom_call.1} parent=1 // pred_check
      _
    $region3: #{tpu_custom_call.1} parent=1 // pred_check_branch
      %10 = sbr.rel (0) target = $region5
    $region4: #{tpu_custom_call.1} parent=1 // pred_region
      _
    $region5: #{tpu_custom_call.1} parent=1 // pred_fallthru
      _
    // Predicated region
    $region6: #{tpu_custom_call.1} parent=1 // pred_check
      _
    $region7: #{tpu_custom_call.1} parent=1 // pred_check_branch
      %12 = sbr.rel (0) target = $region9
    $region8: #{tpu_custom_call.1} parent=1 // pred_region
      _
    $region9: #{tpu_custom_call.1} parent=1 // pred_fallthru
      _
    // Predicated region
    $region10: #{tpu_custom_call.1} parent=1 // pred_check
      _
    $region11: #{tpu_custom_call.1} parent=1 // pred_check_branch
      %14 = sbr.rel (0) target = $region13
    $region12: #{tpu_custom_call.1} parent=1 // pred_region
      _
    $region13: #{tpu_custom_call.1} parent=1 // pred_fallthru
      _
    %v15 = vld [vmem:[%s0] sm:$0xf]
    %v16 = vld [vmem:[%s1] sm:$0xff]
    %v17 = vld [vmem:[%s1 + $0x8] sm:$0xff]
    %v18 = vld [vmem:[%s1 + $0x10] sm:$0xff]
    %v19 = vld [vmem:[%s1 + $0x18] sm:$0xff]
    %v20 = vld [vmem:[%s2] sm:$0x1]
    %v22 = vperm.slane %v20, 0
    %vm24 = vcmask 261120
    %v26 = vsel %vm24, %v15, 0
    %28 = vmatpush.msra.mxu0 0.0
    %29 = vmatpush.msra.mxu0 0.0
    %30 = vmatpush.msra.mxu0 0.0
    %31 = vmatpush.msra.mxu0 0.0
    %32 = vmatpush.msra.mxu0 0.0
    %33 = vmatpush.msra.mxu0 0.0
    %34 = vmatpush.msra.mxu0 0.0
    %35 = vmatpush.msra.mxu0 0.0
    %36 = vmatpush.msra.mxu0 0.0
    %37 = vmatpush.msra.mxu0 0.0
    %38 = vmatpush.msra.mxu0 0.0
    %39 = vmatpush.msra.mxu0 0.0
    %40 = vmatpush.msra.mxu0 %v19
    %41 = vmatpush.msra.mxu0 %v18
    %42 = vmatpush.msra.mxu0 %v17
    %43 = vmatpush.msra.mxu0 %v16
    %44 = vmatmul.f32.gmra.mxu0 %v26
    %v45 = vpop.f32.mrf.mxu0
    %v46 = vadd.f32 %v22, %v45
    %47 = vdwg.mxu0
    %vm48 = vcmask 60416
    %49 = vst.msk [vmem:[#allocation2] sm:$0xf] %vm48, %v46
    // Predicated region
    $region14: #{tpu_custom_call.1} parent=1 // pred_check
      _
    $region15: #{tpu_custom_call.1} parent=1 // pred_check_branch
      %51 = sbr.rel (0) target = $region17
    $region16: #{tpu_custom_call.1} parent=1 // pred_region
      %53 = vsyncadd [#allocation3], 0
      %s55 = sshll.u32 [#allocation2], 4
      %s56 = int_to_ptr.vmem [resolvable:$true] %s55
      %s57 = sshll.u32 %s3, 4
      %s58 = int_to_ptr.hbm [resolvable:$true] %s57
      %60 = dma.vmem_to_hbm [thread:$0]  %s56, 64, %s58, [#allocation3]
    $region17: #{tpu_custom_call.1} parent=1 // pred_fallthru
      _
    // Predicated region
    $region18: #{tpu_custom_call.1} parent=1 // pred_check
      _
    $region19: #{tpu_custom_call.1} parent=1 // pred_check_branch
      %62 = sbr.rel (0) target = $region21
    $region20: #{tpu_custom_call.1} parent=1 // pred_region
      %64 = dma.done [#allocation3], 64
    $region21: #{tpu_custom_call.1} parent=1 // pred_fallthru
      _
    %65 = vsyncpa [#allocation3], 1

</llo_original>
